<compile_context>
chip_gen: v5e
topology: v5e:2x2
jax: 0.10.0
libtpu: 0.0.40
codegen_flags: <defaults>
</compile_context>

<pallas_src>
import jax
import jax.numpy as jnp
from jax import lax
from jax.experimental import pallas as pl
from jax.experimental.pallas import tpu as pltpu

BN_EPS = 1e-5
LANE = 128
VMEM_LIMIT = 32 * 1024 * 1024  # safe on v5e/v6e/v7x; tiles below use only a few MiB


def _round_up(x, m):
    return ((x + m - 1) // m) * m


# ---------------------------------------------------------------------------
# Pass 1: per-channel sum / sum-of-squares of y = W @ x (BN statistics).
# ---------------------------------------------------------------------------
def _stats_kernel(x_ref, w_ref, sum_ref, sq_ref):
    # x_ref:   (2C_pad, tile)   bf16 (batch dim squeezed by BlockSpec)
    # w_ref:   (2Co_pad, 2C_pad) bf16
    # sum_ref: (2Co_pad, 1)     f32 accumulator (resident across the whole grid)
    # sq_ref:  (2Co_pad, 1)     f32 accumulator
    @pl.when(jnp.logical_and(pl.program_id(0) == 0, pl.program_id(1) == 0))
    def _init():
        sum_ref[...] = jnp.zeros_like(sum_ref)
        sq_ref[...] = jnp.zeros_like(sq_ref)

    y = jnp.dot(w_ref[...], x_ref[...], preferred_element_type=jnp.float32)
    sum_ref[...] += jnp.sum(y, axis=1, keepdims=True)
    sq_ref[...] += jnp.sum(y * y, axis=1, keepdims=True)


# ---------------------------------------------------------------------------
# Pass 2: y = W @ x, fused BN affine (precomputed scale/shift) + ReLU.
# ---------------------------------------------------------------------------
def _apply_kernel(x_ref, w_ref, scale_ref, shift_ref, o_ref):
    # x_ref: (2C_pad, tile) bf16; scale/shift: (2Co_pad, 1) f32; o_ref: (2Co_pad, tile) f32
    y = jnp.dot(w_ref[...], x_ref[...], preferred_element_type=jnp.float32)
    o_ref[...] = jnp.maximum(y * scale_ref[...] + shift_ref[...], 0.0)


def fourier_unit_forward(x, w, gamma, beta):
    """x: (N, C, L) float32.  w: (2Co, 2C).  gamma/beta: (2Co,)."""
    N, C, L = x.shape
    Co2 = w.shape[0]
    Co = Co2 // 2
    C2 = 2 * C

    # rfft (ortho) + real/imag channel interleave -> (N, 2C, Lf); no HBM transpose needed.
    ff = jnp.fft.rfft(x.astype(jnp.float32), axis=-1, norm="ortho")  # (N, C, Lf) complex
    Lf = ff.shape[-1]
    ff_ri = jnp.stack([jnp.real(ff), jnp.imag(ff)], axis=2).reshape(N, C2, Lf)

    # Padding: lane-dense columns (multiple of 128), sublane-friendly channels.
    C2p = _round_up(C2, 8)
    Co2p = _round_up(Co2, 8)
    tile = min(512, _round_up(Lf, LANE))     # >=512-lane tiles where possible
    Lfp = _round_up(Lf, tile)
    n_tiles = Lfp // tile

    # bf16 matmul operands (native MXU dtype on v5e/v6e/v7x); padded entries are zero.
    x_slab = jnp.pad(ff_ri, ((0, 0), (0, C2p - C2), (0, Lfp - Lf))).astype(jnp.bfloat16)
    w_pad = jnp.pad(w.astype(jnp.float32), ((0, Co2p - Co2), (0, C2p - C2))).astype(jnp.bfloat16)

    matmul_flops = 2 * Co2p * C2p * N * Lfp
    x_bytes = N * C2p * Lfp * 2
    w_bytes = Co2p * C2p * 2

    # ---- Pass 1: BN statistics (streaming; y never written to HBM) ----
    sums, sqs = pl.pallas_call(
        _stats_kernel,
        out_shape=(jax.ShapeDtypeStruct((Co2p, 1), jnp.float32),
                   jax.ShapeDtypeStruct((Co2p, 1), jnp.float32)),
        grid=(N, n_tiles),
        in_specs=[
            pl.BlockSpec((None, C2p, tile), lambda b, t: (b, 0, t)),
            pl.BlockSpec((Co2p, C2p), lambda b, t: (0, 0)),
        ],
        out_specs=(
            pl.BlockSpec((Co2p, 1), lambda b, t: (0, 0)),
            pl.BlockSpec((Co2p, 1), lambda b, t: (0, 0)),
        ),
        compiler_params=pltpu.CompilerParams(
            dimension_semantics=("arbitrary", "arbitrary"),
            vmem_limit_bytes=VMEM_LIMIT),
        cost_estimate=pl.CostEstimate(
            flops=matmul_flops, transcendentals=0,
            bytes_accessed=x_bytes + w_bytes + 2 * Co2p * 4),
    )(x_slab, w_pad)

    # Fold BN (training-mode batch stats) into per-channel scale/shift (f32).
    m_count = jnp.float32(N * Lf)            # true (unpadded) column count
    mean = sums / m_count                    # (2Co_pad, 1)
    var = jnp.maximum(sqs / m_count - mean * mean, 0.0)
    gamma_p = jnp.pad(gamma.reshape(Co2, 1).astype(jnp.float32), ((0, Co2p - Co2), (0, 0)),
                      constant_values=1.0)
    beta_p = jnp.pad(beta.reshape(Co2, 1).astype(jnp.float32), ((0, Co2p - Co2), (0, 0)))
    scale = gamma_p * lax.rsqrt(var + BN_EPS)
    shift = beta_p - mean * scale

    # ---- Pass 2: matmul + fused affine + ReLU, lane-dense output ----
    y = pl.pallas_call(
        _apply_kernel,
        out_shape=jax.ShapeDtypeStruct((N, Co2p, Lfp), jnp.float32),
        grid=(N, n_tiles),
        in_specs=[
            pl.BlockSpec((None, C2p, tile), lambda b, t: (b, 0, t)),
            pl.BlockSpec((Co2p, C2p), lambda b, t: (0, 0)),
            pl.BlockSpec((Co2p, 1), lambda b, t: (0, 0)),
            pl.BlockSpec((Co2p, 1), lambda b, t: (0, 0)),
        ],
        out_specs=pl.BlockSpec((None, Co2p, tile), lambda b, t: (b, 0, t)),
        compiler_params=pltpu.CompilerParams(
            dimension_semantics=("parallel", "parallel"),
            vmem_limit_bytes=VMEM_LIMIT),
        cost_estimate=pl.CostEstimate(
            flops=matmul_flops, transcendentals=0,
            bytes_accessed=x_bytes + w_bytes + N * Co2p * Lfp * 4),
    )(x_slab, w_pad, scale, shift)

    # Strip padding, de-interleave real/imag channels, inverse FFT.
    y = y[:, :Co2, :Lf]                                  # (N, 2Co, Lf)
    yc = y[:, 0::2, :] + 1j * y[:, 1::2, :]              # (N, Co, Lf) complex
    out = jnp.fft.irfft(yc, n=L, axis=-1, norm="ortho")  # (N, Co, L)
    return out.astype(x.dtype)


def fourier_unit_reference(x, w, gamma, beta):
    """Pure-JAX reference mirroring the kernel's numerics (bf16 matmul, f32 BN)."""
    N, C, L = x.shape
    Co2 = w.shape[0]
    ff = jnp.fft.rfft(x.astype(jnp.float32), axis=-1, norm="ortho")
    Lf = ff.shape[-1]
    ff_ri = jnp.stack([jnp.real(ff), jnp.imag(ff)], axis=2).reshape(N, 2 * C, Lf)
    # 1x1 conv == channel matmul; same operand dtypes as the kernel.
    y = jnp.einsum("oc,ncl->nol",
                   w.astype(jnp.bfloat16), ff_ri.astype(jnp.bfloat16),
                   preferred_element_type=jnp.float32)
    # BN training-mode stats over (N, Lf), same streaming formula as the kernel.
    mean = jnp.mean(y, axis=(0, 2), keepdims=True)
    var = jnp.maximum(jnp.mean(y * y, axis=(0, 2), keepdims=True) - mean * mean, 0.0)
    scale = gamma.reshape(1, Co2, 1).astype(jnp.float32) * lax.rsqrt(var + BN_EPS)
    shift = beta.reshape(1, Co2, 1).astype(jnp.float32) - mean * scale
    y = jnp.maximum(y * scale + shift, 0.0)
    yc = y[:, 0::2, :] + 1j * y[:, 1::2, :]
    return jnp.fft.irfft(yc, n=L, axis=-1, norm="ortho").astype(x.dtype)


if __name__ == "__main__":
    # Small shapes consistent with the module: Conv1d input is (N, 2*C, L//2+1).
    N, C, L = 2, 4, 16
    Cout = 4

    key = jax.random.PRNGKey(0)
    kx, kw = jax.random.split(key)

    x = jax.random.normal(kx, (N, C, L), dtype=jnp.float32)
    # conv weight (2*Cout, 2*C, 1) -> kernel dim squeezed; BN defaults gamma=1, beta=0.
    w = (jax.random.normal(kw, (2 * Cout, 2 * C), dtype=jnp.float32)
         * (1.0 / jnp.sqrt(2.0 * C)))
    gamma = jnp.ones((2 * Cout,), dtype=jnp.float32)
    beta = jnp.zeros((2 * Cout,), dtype=jnp.float32)

    fwd = jax.jit(fourier_unit_forward)
    out = jax.block_until_ready(fwd(x, w, gamma, beta))
    ref = jax.block_until_ready(fourier_unit_reference(x, w, gamma, beta))

    assert out.shape == (N, Cout, L), out.shape
    max_err = float(jnp.max(jnp.abs(out - ref)))
    assert jnp.allclose(out, ref, atol=1e-3, rtol=1e-3), max_err

    print("KERNEL_OK")
</pallas_src>

<mosaic_0001>
module attributes {stable_mosaic.version = 11 : i64} {
  func.func @_stats_kernel(%arg0: i32, %arg1: i32, %arg2: memref<1x8x128xbf16, #tpu.memory_space<vmem>>, %arg3: memref<8x8xbf16, #tpu.memory_space<vmem>>, %arg4: memref<8x1xf32, #tpu.memory_space<vmem>>, %arg5: memref<8x1xf32, #tpu.memory_space<vmem>>) attributes {dimension_semantics = [#tpu.dimension_semantics<arbitrary>, #tpu.dimension_semantics<arbitrary>], iteration_bounds = array<i64: 2, 1>, scalar_prefetch = 0 : i64, scratch_operands = 0 : i64, tpu.core_type = #tpu.core_type<tc>, window_params = [{transform_indices = @transform_0, window_bounds = array<i64: 1, 8, 128>}, {pipeline_mode = #tpu.pipeline_mode<synchronous>, transform_indices = @transform_1, window_bounds = array<i64: 8, 8>}, {pipeline_mode = #tpu.pipeline_mode<synchronous>, transform_indices = @transform_2, window_bounds = array<i64: 8, 1>}, {pipeline_mode = #tpu.pipeline_mode<synchronous>, transform_indices = @transform_3, window_bounds = array<i64: 8, 1>}]} {
    %c0_i32 = arith.constant 0 : i32
    %0 = arith.cmpi eq, %arg0, %c0_i32 : i32
    %c0_i32_0 = arith.constant 0 : i32
    %1 = arith.cmpi eq, %arg1, %c0_i32_0 : i32
    %2 = arith.andi %0, %1 : i1
    %3 = arith.extui %2 : i1 to i32
    %c0_i32_1 = arith.constant 0 : i32
    %4 = arith.cmpi ne, %3, %c0_i32_1 : i32
    scf.if %4 {
      %cst_16 = arith.constant 0.000000e+00 : f32
      %20 = vector.broadcast %cst_16 : f32 to vector<8x1xf32>
      %c0_17 = arith.constant 0 : index
      %c0_18 = arith.constant 0 : index
      %21 = vector.load %arg4[%c0_17, %c0_18] : memref<8x1xf32, #tpu.memory_space<vmem>>, vector<8x1xf32>
      tpu.vector_store %arg4[%c0_17, %c0_18], %20 {strides = array<i32>} : memref<8x1xf32, #tpu.memory_space<vmem>>, vector<8x1xf32>,
      %cst_19 = arith.constant 0.000000e+00 : f32
      %22 = vector.broadcast %cst_19 : f32 to vector<8x1xf32>
      %c0_20 = arith.constant 0 : index
      %c0_21 = arith.constant 0 : index
      %23 = vector.load %arg5[%c0_20, %c0_21] : memref<8x1xf32, #tpu.memory_space<vmem>>, vector<8x1xf32>
      tpu.vector_store %arg5[%c0_20, %c0_21], %22 {strides = array<i32>} : memref<8x1xf32, #tpu.memory_space<vmem>>, vector<8x1xf32>,
    } else {
    }
    %c0 = arith.constant 0 : index
    %c0_2 = arith.constant 0 : index
    %5 = vector.load %arg3[%c0, %c0_2] : memref<8x8xbf16, #tpu.memory_space<vmem>>, vector<8x8xbf16>
    %c0_3 = arith.constant 0 : index
    %c0_4 = arith.constant 0 : index
    %c0_5 = arith.constant 0 : index
    %6 = vector.load %arg2[%c0_3, %c0_4, %c0_5] : memref<1x8x128xbf16, #tpu.memory_space<vmem>>, vector<1x8x128xbf16>
    %7 = vector.shape_cast %6 : vector<1x8x128xbf16> to vector<8x128xbf16>
    %cst = arith.constant dense<0.000000e+00> : vector<8x128xf32>
    %8 = tpu.matmul %5, %7, %cst {dimension_numbers = #tpu.dot_dimension_numbers<[1], [0], [0], [1], [0, 0, 1, 1], [], []>} : vector<8x8xbf16>, vector<8x128xbf16>, vector<8x128xf32> -> vector<8x128xf32>
    %c0_6 = arith.constant 0 : index
    %c0_7 = arith.constant 0 : index
    %9 = vector.load %arg4[%c0_6, %c0_7] : memref<8x1xf32, #tpu.memory_space<vmem>>, vector<8x1xf32>
    %cst_8 = arith.constant dense<0.000000e+00> : vector<8xf32>
    %10 = vector.multi_reduction <add>, %8, %cst_8 [1] : vector<8x128xf32> to vector<8xf32>
    %11 = vector.shape_cast %10 : vector<8xf32> to vector<8x1xf32>
    %12 = arith.addf %9, %11 : vector<8x1xf32>
    %c0_9 = arith.constant 0 : index
    %c0_10 = arith.constant 0 : index
    %13 = vector.load %arg4[%c0_9, %c0_10] : memref<8x1xf32, #tpu.memory_space<vmem>>, vector<8x1xf32>
    tpu.vector_store %arg4[%c0_9, %c0_10], %12 {strides = array<i32>} : memref<8x1xf32, #tpu.memory_space<vmem>>, vector<8x1xf32>,
    %c0_11 = arith.constant 0 : index
    %c0_12 = arith.constant 0 : index
    %14 = vector.load %arg5[%c0_11, %c0_12] : memref<8x1xf32, #tpu.memory_space<vmem>>, vector<8x1xf32>
    %15 = arith.mulf %8, %8 : vector<8x128xf32>
    %cst_13 = arith.constant dense<0.000000e+00> : vector<8xf32>
    %16 = vector.multi_reduction <add>, %15, %cst_13 [1] : vector<8x128xf32> to vector<8xf32>
    %17 = vector.shape_cast %16 : vector<8xf32> to vector<8x1xf32>
    %18 = arith.addf %14, %17 : vector<8x1xf32>
    %c0_14 = arith.constant 0 : index
    %c0_15 = arith.constant 0 : index
    %19 = vector.load %arg5[%c0_14, %c0_15] : memref<8x1xf32, #tpu.memory_space<vmem>>, vector<8x1xf32>
    tpu.vector_store %arg5[%c0_14, %c0_15], %18 {strides = array<i32>} : memref<8x1xf32, #tpu.memory_space<vmem>>, vector<8x1xf32>,
    return
  }
  func.func @transform_0(%arg0: i32, %arg1: i32) -> (i32, i32, i32) {
    %c0_i32 = arith.constant 0 : i32
    %c0_i32_0 = arith.constant 0 : i32
    return %arg0, %c0_i32, %arg1 : i32, i32, i32
  }
  func.func @transform_1(%arg0: i32, %arg1: i32) -> (i32, i32) {
    %c0_i32 = arith.constant 0 : i32
    %c0_i32_0 = arith.constant 0 : i32
    %c0_i32_1 = arith.constant 0 : i32
    return %c0_i32, %c0_i32_0 : i32, i32
  }
  func.func @transform_2(%arg0: i32, %arg1: i32) -> (i32, i32) {
    %c0_i32 = arith.constant 0 : i32
    %c0_i32_0 = arith.constant 0 : i32
    %c0_i32_1 = arith.constant 0 : i32
    return %c0_i32, %c0_i32_0 : i32, i32
  }
  func.func @transform_3(%arg0: i32, %arg1: i32) -> (i32, i32) {
    %c0_i32 = arith.constant 0 : i32
    %c0_i32_0 = arith.constant 0 : i32
    %c0_i32_1 = arith.constant 0 : i32
    return %c0_i32, %c0_i32_0 : i32, i32
  }
}

module attributes {stable_mosaic.version = 11 : i64} {
  func.func @_apply_kernel(%arg0: i32, %arg1: i32, %arg2: memref<1x8x128xbf16, #tpu.memory_space<vmem>>, %arg3: memref<8x8xbf16, #tpu.memory_space<vmem>>, %arg4: memref<8x1xf32, #tpu.memory_space<vmem>>, %arg5: memref<8x1xf32, #tpu.memory_space<vmem>>, %arg6: memref<1x8x128xf32, #tpu.memory_space<vmem>>) attributes {dimension_semantics = [#tpu.dimension_semantics<parallel>, #tpu.dimension_semantics<parallel>], iteration_bounds = array<i64: 2, 1>, scalar_prefetch = 0 : i64, scratch_operands = 0 : i64, tpu.core_type = #tpu.core_type<tc>, window_params = [{transform_indices = @transform_0, window_bounds = array<i64: 1, 8, 128>}, {pipeline_mode = #tpu.pipeline_mode<synchronous>, transform_indices = @transform_1, window_bounds = array<i64: 8, 8>}, {pipeline_mode = #tpu.pipeline_mode<synchronous>, transform_indices = @transform_2, window_bounds = array<i64: 8, 1>}, {pipeline_mode = #tpu.pipeline_mode<synchronous>, transform_indices = @transform_3, window_bounds = array<i64: 8, 1>}, {transform_indices = @transform_4, window_bounds = array<i64: 1, 8, 128>}]} {
    %c0 = arith.constant 0 : index
    %c0_0 = arith.constant 0 : index
    %0 = vector.load %arg3[%c0, %c0_0] : memref<8x8xbf16, #tpu.memory_space<vmem>>, vector<8x8xbf16>
    %c0_1 = arith.constant 0 : index
    %c0_2 = arith.constant 0 : index
    %c0_3 = arith.constant 0 : index
    %1 = vector.load %arg2[%c0_1, %c0_2, %c0_3] : memref<1x8x128xbf16, #tpu.memory_space<vmem>>, vector<1x8x128xbf16>
    %2 = vector.shape_cast %1 : vector<1x8x128xbf16> to vector<8x128xbf16>
    %cst = arith.constant dense<0.000000e+00> : vector<8x128xf32>
    %3 = tpu.matmul %0, %2, %cst {dimension_numbers = #tpu.dot_dimension_numbers<[1], [0], [0], [1], [0, 0, 1, 1], [], []>} : vector<8x8xbf16>, vector<8x128xbf16>, vector<8x128xf32> -> vector<8x128xf32>
    %c0_4 = arith.constant 0 : index
    %c0_5 = arith.constant 0 : index
    %4 = vector.load %arg4[%c0_4, %c0_5] : memref<8x1xf32, #tpu.memory_space<vmem>>, vector<8x1xf32>
    %5 = vector.broadcast %4 : vector<8x1xf32> to vector<8x128xf32>
    %6 = arith.mulf %3, %5 : vector<8x128xf32>
    %c0_6 = arith.constant 0 : index
    %c0_7 = arith.constant 0 : index
    %7 = vector.load %arg5[%c0_6, %c0_7] : memref<8x1xf32, #tpu.memory_space<vmem>>, vector<8x1xf32>
    %8 = vector.broadcast %7 : vector<8x1xf32> to vector<8x128xf32>
    %9 = arith.addf %6, %8 : vector<8x128xf32>
    %cst_8 = arith.constant 0.000000e+00 : f32
    %10 = vector.broadcast %cst_8 : f32 to vector<8x128xf32>
    %11 = arith.maximumf %9, %10 : vector<8x128xf32>
    %c0_9 = arith.constant 0 : index
    %c0_10 = arith.constant 0 : index
    %c0_11 = arith.constant 0 : index
    %12 = vector.load %arg6[%c0_9, %c0_10, %c0_11] : memref<1x8x128xf32, #tpu.memory_space<vmem>>, vector<1x8x128xf32>
    %13 = vector.shape_cast %12 : vector<1x8x128xf32> to vector<8x128xf32>
    %14 = vector.shape_cast %11 : vector<8x128xf32> to vector<1x8x128xf32>
    tpu.vector_store %arg6[%c0_9, %c0_10, %c0_11], %14 {strides = array<i32>} : memref<1x8x128xf32, #tpu.memory_space<vmem>>, vector<1x8x128xf32>,
    return
  }
  func.func @transform_0(%arg0: i32, %arg1: i32) -> (i32, i32, i32) {
    %c0_i32 = arith.constant 0 : i32
    %c0_i32_0 = arith.constant 0 : i32
    return %arg0, %c0_i32, %arg1 : i32, i32, i32
  }
  func.func @transform_1(%arg0: i32, %arg1: i32) -> (i32, i32) {
    %c0_i32 = arith.constant 0 : i32
    %c0_i32_0 = arith.constant 0 : i32
    %c0_i32_1 = arith.constant 0 : i32
    return %c0_i32, %c0_i32_0 : i32, i32
  }
  func.func @transform_2(%arg0: i32, %arg1: i32) -> (i32, i32) {
    %c0_i32 = arith.constant 0 : i32
    %c0_i32_0 = arith.constant 0 : i32
    %c0_i32_1 = arith.constant 0 : i32
    return %c0_i32, %c0_i32_0 : i32, i32
  }
  func.func @transform_3(%arg0: i32, %arg1: i32) -> (i32, i32) {
    %c0_i32 = arith.constant 0 : i32
    %c0_i32_0 = arith.constant 0 : i32
    %c0_i32_1 = arith.constant 0 : i32
    return %c0_i32, %c0_i32_0 : i32, i32
  }
  func.func @transform_4(%arg0: i32, %arg1: i32) -> (i32, i32, i32) {
    %c0_i32 = arith.constant 0 : i32
    %c0_i32_0 = arith.constant 0 : i32
    return %arg0, %c0_i32, %arg1 : i32, i32, i32
  }
}

</mosaic_0001>

<llo_original>
// kernel: reverse.1
$region0: #{reverse.1}
  %s0 = inlined_call_operand.vmem [shape: f32[2,4,7], index: 0, kind: input, shape index: {}]
  %s1 = inlined_call_operand.vmem [shape: f32[2,4,7], index: 1, kind: output, shape index: {}]
  %v2 = vlaneseq
  %v3 = vsub.s32 6, %v2
  %4 = vset.pattern.permute.xlu0 %v3
  $region1: #{reverse.1} parent=0
    #allocation0 [shape = 'u8[8192]{0}', space=vmem, size = 0x2000, scoped, tag = 'operand span for operand 0']
    #allocation1 [shape = 'u8[4096]{0}', space=vmem, size = 0x1000, scoped, tag = 'packed  for operand 0']
    #allocation2 [shape = 'u8[8192]{0}', space=vmem, size = 0x2000, scoped, tag = 'operand span for operand 1']
    #allocation3 [shape = 'u8[4096]{0}', space=vmem, size = 0x1000, scoped, tag = 'packed  for operand 1']
    // Predicated region
    $region2: #{reverse.1} parent=1 // pred_check
      _
    $region3: #{reverse.1} parent=1 // pred_check_branch
      %6 = sbr.rel (0) target = $region5
    $region4: #{reverse.1} parent=1 // pred_region
      // Predicated region
      $region6: #{reverse.1} parent=4 // pred_check
        _
      $region7: #{reverse.1} parent=4 // pred_check_branch
        %8 = sbr.rel target = $region9
      $region8: #{reverse.1} parent=4 // pred_region
        // Predicated region
        $region21: #{reverse.1} parent=8 // pred_check
          _
        $region22: #{reverse.1} parent=8 // pred_check_branch
          %26 = sbr.rel (0) target = $region24
        $region23: #{reverse.1} parent=8 // pred_region
          loop: start=0, step=1, limit=1
          $region25: #{reverse.1} parent=23 // loop_pre_header
            _
          $region26: #{reverse.1} parent=23 // loop_header
            %s28 = sphi 0, %s32
            %p29 = scmp.ge.s32.totalorder %s28, 1
            %s33 = sphi %s0, %s0
            %s34 = sphi [#allocation1], [#allocation1]
          $region27: #{reverse.1} parent=23 // loop_header_branch
            %31 = sbr.rel (%p29) target = $region31
          $region28: #{reverse.1} parent=23 // loop_body
            _
          $region29: #{reverse.1} parent=23 // loop_footer
            %s32 = sadd.s32 1, %s28
          $region30: #{reverse.1} parent=23 // loop_footer_branch
            %27 = sbr.rel target = $region26
          $region31: #{reverse.1} parent=23 // loop_exit
            _
          %s36 = ssub.s32 16, 1
          loop: start=0, step=1, limit=1
          $region32: #{reverse.1} parent=23 // loop_pre_header
            _
          $region33: #{reverse.1} parent=23 // loop_header
            %s38 = sphi 0, %s42
            %p39 = scmp.ge.s32.totalorder %s38, 1
            %s43 = sphi %s0, %s0
            %s44 = sphi [#allocation1], [#allocation1]
          $region34: #{reverse.1} parent=23 // loop_header_branch
            %41 = sbr.rel (%p39) target = $region38
          $region35: #{reverse.1} parent=23 // loop_body
            %v45 = vld [vmem:[%s43] sm:%s36]
            %46 = vst [vmem:[%s44] sm:%s36] %v45
            %v47 = vld [vmem:[%s43 + $0x4] sm:%s36]
            %48 = vst [vmem:[%s44 + $0x4] sm:%s36] %v47
          $region36: #{reverse.1} parent=23 // loop_footer
            %s42 = sadd.s32 1, %s38
          $region37: #{reverse.1} parent=23 // loop_footer_branch
            %37 = sbr.rel target = $region33
          $region38: #{reverse.1} parent=23 // loop_exit
            _
        $region24: #{reverse.1} parent=8 // pred_fallthru
          _
      $region9: #{reverse.1} parent=4 // pred_fallthru
        _
      // Predicated region
      $region10: #{reverse.1} parent=4 // pred_check
        _
      $region11: #{reverse.1} parent=4 // pred_check_branch
        %10 = sbr.rel (0) target = $region13
      $region12: #{reverse.1} parent=4 // pred_region
        %s12 = ssub.s32 16, 1
        loop: start=0, step=1, limit=1
        $region14: #{reverse.1} parent=12 // loop_pre_header
          _
        $region15: #{reverse.1} parent=12 // loop_header
          %s14 = sphi 0, %s18
          %p15 = scmp.ge.s32.totalorder %s14, 1
          %s19 = sphi %s0, %s0
          %s20 = sphi [#allocation1], [#allocation1]
        $region16: #{reverse.1} parent=12 // loop_header_branch
          %17 = sbr.rel (%p15) target = $region20
        $region17: #{reverse.1} parent=12 // loop_body
          %v21 = vld [vmem:[%s19] sm:%s12]
          %22 = vst [vmem:[%s20] sm:%s12] %v21
          %v23 = vld [vmem:[%s19 + $0x4] sm:%s12]
          %24 = vst [vmem:[%s20 + $0x4] sm:%s12] %v23
        $region18: #{reverse.1} parent=12 // loop_footer
          %s18 = sadd.s32 1, %s14
        $region19: #{reverse.1} parent=12 // loop_footer_branch
          %13 = sbr.rel target = $region15
        $region20: #{reverse.1} parent=12 // loop_exit
          _
      $region13: #{reverse.1} parent=4 // pred_fallthru
        _
    $region5: #{reverse.1} parent=1 // pred_fallthru
      _
    %49 = vnop
    %s51 = ssub.s32 16, 1
    %s52 = scalar_lea.vmem [#allocation1], 4
    %v53 = vld [vmem:[%s52] sm:%s51]
    %s54 = scalar_lea.vmem [#allocation0], 8
    %55 = vst [vmem:[%s54] sm:%s51] %v53
    %v56 = vld [vmem:[#allocation1] sm:%s51]
    %57 = vst [vmem:[#allocation0] sm:%s51] %v56
    %v58 = vld [vmem:[#allocation0] sm:$0xff]
    %59 = vperm.xlu0 %4, %v58
    %v60 = vpop.permute.xlu0 %59
    %61 = vst [vmem:[#allocation2] sm:$0xff] %v60
    %s62 = scalar_lea.vmem [#allocation2], 8
    %s63 = scalar_lea.vmem [#allocation0], 8
    %v64 = vld [vmem:[%s63] sm:$0xff]
    %65 = vperm.xlu0 %4, %v64
    %v66 = vpop.permute.xlu0 %65
    %67 = vst [vmem:[%s62] sm:$0xff] %v66
    %s69 = ssub.s32 16, 1
    %v70 = vld [vmem:[#allocation2] sm:%s69]
    %s72 = ssub.s32 16, 1
    %73 = vst [vmem:[#allocation3] sm:%s72] %v70
    %s74 = scalar_lea.vmem [#allocation2], 8
    %v75 = vld [vmem:[%s74] sm:%s69]
    %s77 = ssub.s32 16, 1
    %s78 = scalar_lea.vmem [#allocation3], 4
    %79 = vst [vmem:[%s78] sm:%s77] %v75
    // Predicated region
    $region39: #{reverse.1} parent=1 // pred_check
      _
    $region40: #{reverse.1} parent=1 // pred_check_branch
      %81 = sbr.rel (0) target = $region42
    $region41: #{reverse.1} parent=1 // pred_region
      // Predicated region
      $region43: #{reverse.1} parent=41 // pred_check
        _
      $region44: #{reverse.1} parent=41 // pred_check_branch
        %83 = sbr.rel target = $region46
      $region45: #{reverse.1} parent=41 // pred_region
        // Predicated region
        $region58: #{reverse.1} parent=45 // pred_check
          _
        $region59: #{reverse.1} parent=45 // pred_check_branch
          %101 = sbr.rel (0) target = $region61
        $region60: #{reverse.1} parent=45 // pred_region
          loop: start=0, step=1, limit=1
          $region62: #{reverse.1} parent=60 // loop_pre_header
            _
          $region63: #{reverse.1} parent=60 // loop_header
            %s103 = sphi 0, %s107
            %p104 = scmp.ge.s32.totalorder %s103, 1
            %s108 = sphi [#allocation3], [#allocation3]
            %s109 = sphi %s1, %s1
          $region64: #{reverse.1} parent=60 // loop_header_branch
            %106 = sbr.rel (%p104) target = $region68
          $region65: #{reverse.1} parent=60 // loop_body
            _
          $region66: #{reverse.1} parent=60 // loop_footer
            %s107 = sadd.s32 1, %s103
          $region67: #{reverse.1} parent=60 // loop_footer_branch
            %102 = sbr.rel target = $region63
          $region68: #{reverse.1} parent=60 // loop_exit
            _
          %s111 = ssub.s32 16, 1
          loop: start=0, step=1, limit=1
          $region69: #{reverse.1} parent=60 // loop_pre_header
            _
          $region70: #{reverse.1} parent=60 // loop_header
            %s113 = sphi 0, %s117
            %p114 = scmp.ge.s32.totalorder %s113, 1
            %s118 = sphi [#allocation3], [#allocation3]
            %s119 = sphi %s1, %s1
          $region71: #{reverse.1} parent=60 // loop_header_branch
            %116 = sbr.rel (%p114) target = $region75
          $region72: #{reverse.1} parent=60 // loop_body
            %v120 = vld [vmem:[%s118] sm:%s111]
            %121 = vst [vmem:[%s119] sm:%s111] %v120
            %v122 = vld [vmem:[%s118 + $0x4] sm:%s111]
            %123 = vst [vmem:[%s119 + $0x4] sm:%s111] %v122
          $region73: #{reverse.1} parent=60 // loop_footer
            %s117 = sadd.s32 1, %s113
          $region74: #{reverse.1} parent=60 // loop_footer_branch
            %112 = sbr.rel target = $region70
          $region75: #{reverse.1} parent=60 // loop_exit
            _
        $region61: #{reverse.1} parent=45 // pred_fallthru
          _
      $region46: #{reverse.1} parent=41 // pred_fallthru
        _
      // Predicated region
      $region47: #{reverse.1} parent=41 // pred_check
        _
      $region48: #{reverse.1} parent=41 // pred_check_branch
        %85 = sbr.rel (0) target = $region50
      $region49: #{reverse.1} parent=41 // pred_region
        %s87 = ssub.s32 16, 1
        loop: start=0, step=1, limit=1
        $region51: #{reverse.1} parent=49 // loop_pre_header
          _
        $region52: #{reverse.1} parent=49 // loop_header
          %s89 = sphi 0, %s93
          %p90 = scmp.ge.s32.totalorder %s89, 1
          %s94 = sphi [#allocation3], [#allocation3]
          %s95 = sphi %s1, %s1
        $region53: #{reverse.1} parent=49 // loop_header_branch
          %92 = sbr.rel (%p90) target = $region57
        $region54: #{reverse.1} parent=49 // loop_body
          %v96 = vld [vmem:[%s94] sm:%s87]
          %97 = vst [vmem:[%s95] sm:%s87] %v96
          %v98 = vld [vmem:[%s94 + $0x4] sm:%s87]
          %99 = vst [vmem:[%s95 + $0x4] sm:%s87] %v98
        $region55: #{reverse.1} parent=49 // loop_footer
          %s93 = sadd.s32 1, %s89
        $region56: #{reverse.1} parent=49 // loop_footer_branch
          %88 = sbr.rel target = $region52
        $region57: #{reverse.1} parent=49 // loop_exit
          _
      $region50: #{reverse.1} parent=41 // pred_fallthru
        _
    $region42: #{reverse.1} parent=1 // pred_fallthru
      _
    %124 = vnop

// kernel: fourier_unit_forward.3
$region0: #{fourier_unit_forward.3}
  #allocation0 [shape = 'u32[]', space=smem, size = 0x4, offset = 0x4, fixed_abs, tag = 'smem constant byte address 0x4 - core index']
  #allocation1 [shape = 'u32[72,128]{1,0:T(1,128)}', space=vmem, size = 0x9000, scoped, tag = 'internal scratch']
  %s0 = inlined_call_operand.vmem [shape: bf16[2,8,128], index: 0, kind: input, shape index: {}]
  %s1 = inlined_call_operand.vmem [shape: bf16[8,8], index: 1, kind: input, shape index: {}]
  %s2 = inlined_call_operand.vmem [shape: f32[8,1], index: 2, kind: input, shape index: {}]
  %s3 = inlined_call_operand.vmem [shape: f32[8,1], index: 3, kind: input, shape index: {}]
  %s4 = inlined_call_operand.vmem [shape: f32[2,8,128], index: 4, kind: output, shape index: {}]
  %s5 = sld [smem:[#allocation0]]
  $region49: #{fourier_unit_forward.3} parent=0
    _
  %s7 = ssub.s32 1, %s5
  %s8 = scalar_select 0, %s7, %s5
  loop: start=0, step=1, limit=4
  $region2: #{fourier_unit_forward.3} parent=0 // loop_pre_header
    _
  $region3: #{fourier_unit_forward.3} parent=0 // loop_header
    %s10 = sphi 0, %s14
    %p11 = scmp.ge.s32.totalorder %s10, 4
    %s17 = sphi 0, %s29
    %s18 = sphi 0, %s25
    %s19 = sphi 0, %s17
    %s20 = sphi 0, %s18
    %s21 = sphi 0, %s19
    %s22 = sphi 0, %s20
    %s34 = sphi 0, %s36
    %s37 = sphi 0, %s34
    %s38 = sphi 0, %s37
    %s54 = sphi 0, %s38
    %s58 = sphi 0, %s58
    %s60 = sphi 0, %s58
    %s61 = sphi 0, %s60
    %s75 = sphi 0, %s61
    %s79 = sphi 0, %s79
    %s81 = sphi 0, %s79
    %s82 = sphi 0, %s81
    %s96 = sphi 0, %s82
    %s100 = sphi 0, %s100
    %s102 = sphi 0, %s100
    %s103 = sphi 0, %s102
    %s117 = sphi 0, %s103
    %s125 = sphi 0, %s127
    %s128 = sphi 0, %s125
    %s129 = sphi 0, %s128
    %s145 = sphi 0, %s129
  $region4: #{fourier_unit_forward.3} parent=0 // loop_header_branch
    %13 = sbr.rel (%p11) target = $region8
  $region5: #{fourier_unit_forward.3} parent=0 // loop_body
    %s15 = ssub.s32 %s10, 1
    %s16 = ssub.s32 %s10, 2
    %s23 = sadd.s32 1, %s18
    %p24 = scmp.ge.s32.totalorder %s23, 1
    %s25 = scalar_select %p24, 0, %s23
    %s26 = sadd.s32 1, %s17
    %s27 = scalar_select %p24, %s26, %s17
    %p28 = scmp.ge.s32.totalorder %s27, 2
    %s29 = scalar_select %p28, 0, %s27
    %s30 = ssub.s32 %s17, %s29
    %s31 = ssub.s32 %s18, %s25
    %s32 = sor.u32 %s30, %s31
    %p33 = scmp.eq.s32.totalorder %s32, 0
    %s35 = sadd.s32 %s34, 1
    %s36 = scalar_select %p33, %s34, %s35
    %p39 = pneg %p33
    %p40 = scmp.eq.s32.totalorder %s10, 1
    %p41 = por %p39, %p40
    %p42 = scmp.ne.s32.totalorder %s34, %s37
    %p43 = scmp.eq.s32.totalorder %s10, 0
    %p44 = por %p42, %p43
    %p45 = scmp.ne.s32.totalorder %s34, %s37
    %p46 = scmp.eq.s32.totalorder %s15, 1
    %p47 = por %p45, %p46
    %p48 = scmp.ne.s32.totalorder %s37, %s38
    %p49 = scmp.eq.s32.totalorder %s15, 0
    %p50 = por %p48, %p49
    %p51 = scmp.ne.s32.totalorder %s37, %s38
    %p52 = scmp.eq.s32.totalorder %s16, 1
    %p53 = por %p51, %p52
    %p55 = scmp.ne.s32.totalorder %s38, %s54
    %p56 = scmp.eq.s32.totalorder %s16, 0
    %p57 = por %p55, %p56
    %s59 = sadd.s32 %s58, 1
    %p62 = scmp.eq.s32.totalorder %s10, 1
    %p63 = scmp.ne.s32.totalorder %s58, %s60
    %p64 = scmp.eq.s32.totalorder %s10, 0
    %p65 = por %p63, %p64
    %p66 = scmp.ne.s32.totalorder %s58, %s60
    %p67 = scmp.eq.s32.totalorder %s15, 1
    %p68 = por %p66, %p67
    %p69 = scmp.ne.s32.totalorder %s60, %s61
    %p70 = scmp.eq.s32.totalorder %s15, 0
    %p71 = por %p69, %p70
    %p72 = scmp.ne.s32.totalorder %s60, %s61
    %p73 = scmp.eq.s32.totalorder %s16, 1
    %p74 = por %p72, %p73
    %p76 = scmp.ne.s32.totalorder %s61, %s75
    %p77 = scmp.eq.s32.totalorder %s16, 0
    %p78 = por %p76, %p77
    %s80 = sadd.s32 %s79, 1
    %p83 = scmp.eq.s32.totalorder %s10, 1
    %p84 = scmp.ne.s32.totalorder %s79, %s81
    %p85 = scmp.eq.s32.totalorder %s10, 0
    %p86 = por %p84, %p85
    %p87 = scmp.ne.s32.totalorder %s79, %s81
    %p88 = scmp.eq.s32.totalorder %s15, 1
    %p89 = por %p87, %p88
    %p90 = scmp.ne.s32.totalorder %s81, %s82
    %p91 = scmp.eq.s32.totalorder %s15, 0
    %p92 = por %p90, %p91
    %p93 = scmp.ne.s32.totalorder %s81, %s82
    %p94 = scmp.eq.s32.totalorder %s16, 1
    %p95 = por %p93, %p94
    %p97 = scmp.ne.s32.totalorder %s82, %s96
    %p98 = scmp.eq.s32.totalorder %s16, 0
    %p99 = por %p97, %p98
    %s101 = sadd.s32 %s100, 1
    %p104 = scmp.eq.s32.totalorder %s10, 1
    %p105 = scmp.ne.s32.totalorder %s100, %s102
    %p106 = scmp.eq.s32.totalorder %s10, 0
    %p107 = por %p105, %p106
    %p108 = scmp.ne.s32.totalorder %s100, %s102
    %p109 = scmp.eq.s32.totalorder %s15, 1
    %p110 = por %p108, %p109
    %p111 = scmp.ne.s32.totalorder %s102, %s103
    %p112 = scmp.eq.s32.totalorder %s15, 0
    %p113 = por %p111, %p112
    %p114 = scmp.ne.s32.totalorder %s102, %s103
    %p115 = scmp.eq.s32.totalorder %s16, 1
    %p116 = por %p114, %p115
    %p118 = scmp.ne.s32.totalorder %s103, %s117
    %p119 = scmp.eq.s32.totalorder %s16, 0
    %p120 = por %p118, %p119
    %s121 = ssub.s32 %s17, %s29
    %s122 = ssub.s32 %s18, %s25
    %s123 = sor.u32 %s121, %s122
    %p124 = scmp.eq.s32.totalorder %s123, 0
    %s126 = sadd.s32 %s125, 1
    %s127 = scalar_select %p124, %s125, %s126
    %p130 = pneg %p124
    %p131 = scmp.eq.s32.totalorder %s10, 1
    %p132 = por %p130, %p131
    %p133 = scmp.ne.s32.totalorder %s125, %s128
    %p134 = scmp.eq.s32.totalorder %s10, 0
    %p135 = por %p133, %p134
    %p136 = scmp.ne.s32.totalorder %s125, %s128
    %p137 = scmp.eq.s32.totalorder %s15, 1
    %p138 = por %p136, %p137
    %p139 = scmp.ne.s32.totalorder %s128, %s129
    %p140 = scmp.eq.s32.totalorder %s15, 0
    %p141 = por %p139, %p140
    %p142 = scmp.ne.s32.totalorder %s128, %s129
    %p143 = scmp.eq.s32.totalorder %s16, 1
    %p144 = por %p142, %p143
    %p146 = scmp.ne.s32.totalorder %s129, %s145
    %p147 = scmp.eq.s32.totalorder %s16, 0
    %p148 = por %p146, %p147
    %p149 = scmp.le.s32.totalorder 1, %s10
    %p150 = scmp.lt.s32.totalorder %s10, 3
    %p151 = pnand %p149, %p150
    %p152 = pneg %p151
    // Predicated region
    $region9: #{fourier_unit_forward.3} parent=5 // pred_check
      _
    $region10: #{fourier_unit_forward.3} parent=5 // pred_check_branch
      %154 = sbr.rel (%p151) target = $region12
    $region11: #{fourier_unit_forward.3} parent=5 // pred_region
      %s155 = ssub.s32 %s10, 1
      // Predicated region
      $region13: #{fourier_unit_forward.3} parent=11 // pred_check
        %p156 = pneg %p71
      $region14: #{fourier_unit_forward.3} parent=11 // pred_check_branch
        %158 = sbr.rel (%p156) target = $region16
      $region15: #{fourier_unit_forward.3} parent=11 // pred_region
        _
      $region16: #{fourier_unit_forward.3} parent=11 // pred_fallthru
        _
      // Predicated region
      $region17: #{fourier_unit_forward.3} parent=11 // pred_check
        %p159 = pneg %p92
      $region18: #{fourier_unit_forward.3} parent=11 // pred_check_branch
        %161 = sbr.rel (%p159) target = $region20
      $region19: #{fourier_unit_forward.3} parent=11 // pred_region
        _
      $region20: #{fourier_unit_forward.3} parent=11 // pred_fallthru
        _
      // Predicated region
      $region21: #{fourier_unit_forward.3} parent=11 // pred_check
        %p162 = pneg %p113
      $region22: #{fourier_unit_forward.3} parent=11 // pred_check_branch
        %164 = sbr.rel (%p162) target = $region24
      $region23: #{fourier_unit_forward.3} parent=11 // pred_region
        _
      $region24: #{fourier_unit_forward.3} parent=11 // pred_fallthru
        _
    $region12: #{fourier_unit_forward.3} parent=5 // pred_fallthru
      _
    %p165 = scmp.lt.s32.totalorder %s10, 2
    // Predicated region
    $region25: #{fourier_unit_forward.3} parent=5 // pred_check
      %p166 = pneg %p165
    $region26: #{fourier_unit_forward.3} parent=5 // pred_check_branch
      %168 = sbr.rel (%p166) target = $region28
    $region27: #{fourier_unit_forward.3} parent=5 // pred_region
      // Predicated region
      $region29: #{fourier_unit_forward.3} parent=27 // pred_check
        %p169 = pneg %p44
      $region30: #{fourier_unit_forward.3} parent=27 // pred_check_branch
        %171 = sbr.rel (%p169) target = $region32
      $region31: #{fourier_unit_forward.3} parent=27 // pred_region
        %p172 = scmp.lt.s32.totalorder %s17, 1
        %s173 = scalar_select %p172, %s17, 1
        %p174 = scmp.lt.s32.totalorder %s18, 0
        %s175 = scalar_select %p174, %s18, 0
        %s176 = sadd.s32 %s175, %s173
        %s177 = smul.addr %s176, 4
        %s178 = scalar_lea.vmem %s0, %s177
      $region32: #{fourier_unit_forward.3} parent=27 // pred_fallthru
        _
    $region28: #{fourier_unit_forward.3} parent=5 // pred_fallthru
      _
    %p179 = scmp.le.s32.totalorder 1, %s10
    %p180 = scmp.lt.s32.totalorder %s10, 3
    %p181 = pnand %p179, %p180
    %p182 = pneg %p181
    // Predicated region
    $region33: #{fourier_unit_forward.3} parent=5 // pred_check
      _
    $region34: #{fourier_unit_forward.3} parent=5 // pred_check_branch
      %184 = sbr.rel (%p181) target = $region36
    $region35: #{fourier_unit_forward.3} parent=5 // pred_region
      %s185 = ssub.s32 %s10, 1
      %p186 = scmp.lt.s32.totalorder %s19, 1
      %s187 = scalar_select %p186, %s19, 1
      %p188 = scmp.lt.s32.totalorder %s20, 0
      %s189 = scalar_select %p188, %s20, 0
      %s190 = sadd.s32 %s189, %s187
      %s191 = smul.addr %s190, 4
      %s192 = scalar_lea.vmem %s0, %s191
      %p193 = pneg %p50
      %p194 = pneg %p47
      %p195 = pneg %p71
      %p196 = pneg %p68
      %p197 = pneg %p92
      %p198 = pneg %p89
      %p199 = pneg %p113
      %p200 = pneg %p110
      %p201 = pneg %p141
      %p202 = pneg %p138
      %p203 = scmp.lt.s32.totalorder %s19, 1
      %s204 = scalar_select %p203, %s19, 1
      %p205 = scmp.lt.s32.totalorder %s20, 0
      %s206 = scalar_select %p205, %s20, 0
      %s207 = sadd.s32 %s206, %s204
      %s208 = smul.addr %s207, 8
      %s209 = scalar_lea.vmem %s4, %s208
      %p210 = scmp.lt.s32.totalorder %s19, 1
      %s211 = scalar_select %p210, %s19, 1
      %p212 = scmp.lt.s32.totalorder %s20, 0
      %s213 = scalar_select %p212, %s20, 0
      %s214 = sadd.s32 %s213, %s211
      %s215 = smul.addr %s214, 4
      %s216 = scalar_lea.vmem %s0, %s215
      %p217 = scmp.lt.s32.totalorder %s19, 1
      %s218 = scalar_select %p217, %s19, 1
      %p219 = scmp.lt.s32.totalorder %s20, 0
      %s220 = scalar_select %p219, %s20, 0
      %s221 = sadd.s32 %s220, %s218
      %s222 = smul.addr %s221, 8
      %s223 = scalar_lea.vmem %s4, %s222
      %v225 = vld [vmem:[%s1] sm:$0xf]
      %v226 = vld [vmem:[%s216] sm:$0xf]
      %vm227 = vcmask 64512
      %v229 = vsel %vm227, %v225, 0
      %vm231 = vcmask 1043456
      %v233 = vsel %vm231, %v226, 0
      %235 = vmatpush.bf16.msra.mxu0 0
      %236 = vmatpush.bf16.msra.mxu0 0
      %237 = vmatpush.bf16.msra.mxu0 0
      %238 = vmatpush.bf16.msra.mxu0 0
      %239 = vmatpush.bf16.msra.mxu0 0
      %240 = vmatpush.bf16.msra.mxu0 0
      %241 = vmatpush.bf16.msra.mxu0 0
      %242 = vmatpush.bf16.msra.mxu0 %v233
      %243 = vmatmul.bf16.gmra.mxu0 %v229
      %v244 = vpop.f32.mrf.mxu0
      %v245 = vadd.f32 0.0, %v244
      %v246 = vpop.f32.mrf.mxu0
      %247 = vdwg.mxu0
      %v248 = vld [vmem:[%s2] sm:$0xff]
      %250 = vset.pattern.permute.xlu0 0
      %251 = vperm.xlu0 %250, %v248
      %v252 = vpop.permute.xlu0 %251
      %v254 = vmul.f32 %v245, %v252
      %v255 = vld [vmem:[%s3] sm:$0xff]
      %257 = vset.pattern.permute.xlu0 0
      %258 = vperm.xlu0 %257, %v255
      %v259 = vpop.permute.xlu0 %258
      %v261 = vadd.f32 %v254, %v259
      %v262 = vmax.f32 %v261, 0.0
      %263 = vst [vmem:[%s223] sm:$0xff] %v262
      %p264 = scmp.lt.s32.totalorder %s19, 1
      %s265 = scalar_select %p264, %s19, 1
      %p266 = scmp.lt.s32.totalorder %s20, 0
      %s267 = scalar_select %p266, %s20, 0
      %s268 = sadd.s32 %s267, %s265
      %s269 = smul.addr %s268, 8
      %s270 = scalar_lea.vmem %s4, %s269
      // Predicated region
      $region37: #{fourier_unit_forward.3} parent=35 // pred_check
        %p271 = pneg %p138
      $region38: #{fourier_unit_forward.3} parent=35 // pred_check_branch
        %273 = sbr.rel (%p271) target = $region40
      $region39: #{fourier_unit_forward.3} parent=35 // pred_region
        _
      $region40: #{fourier_unit_forward.3} parent=35 // pred_fallthru
        _
    $region36: #{fourier_unit_forward.3} parent=5 // pred_fallthru
      _
    %p274 = scmp.le.s32.totalorder 2, %s10
    // Predicated region
    $region41: #{fourier_unit_forward.3} parent=5 // pred_check
      %p275 = pneg %p274
    $region42: #{fourier_unit_forward.3} parent=5 // pred_check_branch
      %277 = sbr.rel (%p275) target = $region44
    $region43: #{fourier_unit_forward.3} parent=5 // pred_region
      %s278 = ssub.s32 %s10, 2
      // Predicated region
      $region45: #{fourier_unit_forward.3} parent=43 // pred_check
        %p279 = pneg %p144
      $region46: #{fourier_unit_forward.3} parent=43 // pred_check_branch
        %281 = sbr.rel (%p279) target = $region48
      $region47: #{fourier_unit_forward.3} parent=43 // pred_region
        %p282 = scmp.lt.s32.totalorder %s21, 1
        %s283 = scalar_select %p282, %s21, 1
        %p284 = scmp.lt.s32.totalorder %s22, 0
        %s285 = scalar_select %p284, %s22, 0
        %s286 = sadd.s32 %s285, %s283
        %s287 = smul.addr %s286, 8
        %s288 = scalar_lea.vmem %s4, %s287
      $region48: #{fourier_unit_forward.3} parent=43 // pred_fallthru
        _
    $region44: #{fourier_unit_forward.3} parent=5 // pred_fallthru
      _
  $region6: #{fourier_unit_forward.3} parent=0 // loop_footer
    %s14 = sadd.s32 1, %s10
  $region7: #{fourier_unit_forward.3} parent=0 // loop_footer_branch
    %9 = sbr.rel target = $region3
  $region8: #{fourier_unit_forward.3} parent=0 // loop_exit
    _

// kernel: fourier_unit_forward.2
$region0: #{fourier_unit_forward.2}
  #allocation0 [shape = 'u32[]', space=smem, size = 0x4, offset = 0x4, fixed_abs, tag = 'smem constant byte address 0x4 - core index']
  #allocation1 [shape = 'u32[72,128]{1,0:T(1,128)}', space=vmem, size = 0x9000, scoped, tag = 'internal scratch']
  %s0 = inlined_call_operand.vmem [shape: bf16[2,8,128], index: 0, kind: input, shape index: {}]
  %s1 = inlined_call_operand.vmem [shape: bf16[8,8], index: 1, kind: input, shape index: {}]
  %s2 = inlined_call_operand.vmem [shape: f32[8,1], index: 2, kind: output, shape index: {0}]
  %s3 = inlined_call_operand.vmem [shape: f32[8,1], index: 3, kind: output, shape index: {1}]
  %4 = xla_tuple %s2, %s3
  %s5 = sld [smem:[#allocation0]]
  $region53: #{fourier_unit_forward.2} parent=0
    _
  %s7 = ssub.s32 1, %s5
  %s8 = scalar_select 0, %s7, %s5
  loop: start=0, step=1, limit=4
  $region2: #{fourier_unit_forward.2} parent=0 // loop_pre_header
    _
  $region3: #{fourier_unit_forward.2} parent=0 // loop_header
    %s10 = sphi 0, %s14
    %p11 = scmp.ge.s32.totalorder %s10, 4
    %s17 = sphi 0, %s29
    %s18 = sphi 0, %s25
    %s19 = sphi 0, %s17
    %s20 = sphi 0, %s18
    %s21 = sphi 0, %s19
    %s22 = sphi 0, %s20
    %s34 = sphi 0, %s36
    %s37 = sphi 0, %s34
    %s38 = sphi 0, %s37
    %s54 = sphi 0, %s38
    %s58 = sphi 0, %s58
    %s60 = sphi 0, %s58
    %s61 = sphi 0, %s60
    %s75 = sphi 0, %s61
    %s79 = sphi 0, %s79
    %s81 = sphi 0, %s79
    %s82 = sphi 0, %s81
    %s96 = sphi 0, %s82
    %s100 = sphi 0, %s100
    %s102 = sphi 0, %s100
    %s103 = sphi 0, %s102
    %s117 = sphi 0, %s103
  $region4: #{fourier_unit_forward.2} parent=0 // loop_header_branch
    %13 = sbr.rel (%p11) target = $region8
  $region5: #{fourier_unit_forward.2} parent=0 // loop_body
    %s15 = ssub.s32 %s10, 1
    %s16 = ssub.s32 %s10, 2
    %s23 = sadd.s32 1, %s18
    %p24 = scmp.ge.s32.totalorder %s23, 1
    %s25 = scalar_select %p24, 0, %s23
    %s26 = sadd.s32 1, %s17
    %s27 = scalar_select %p24, %s26, %s17
    %p28 = scmp.ge.s32.totalorder %s27, 2
    %s29 = scalar_select %p28, 0, %s27
    %s30 = ssub.s32 %s17, %s29
    %s31 = ssub.s32 %s18, %s25
    %s32 = sor.u32 %s30, %s31
    %p33 = scmp.eq.s32.totalorder %s32, 0
    %s35 = sadd.s32 %s34, 1
    %s36 = scalar_select %p33, %s34, %s35
    %p39 = pneg %p33
    %p40 = scmp.eq.s32.totalorder %s10, 1
    %p41 = por %p39, %p40
    %p42 = scmp.ne.s32.totalorder %s34, %s37
    %p43 = scmp.eq.s32.totalorder %s10, 0
    %p44 = por %p42, %p43
    %p45 = scmp.ne.s32.totalorder %s34, %s37
    %p46 = scmp.eq.s32.totalorder %s15, 1
    %p47 = por %p45, %p46
    %p48 = scmp.ne.s32.totalorder %s37, %s38
    %p49 = scmp.eq.s32.totalorder %s15, 0
    %p50 = por %p48, %p49
    %p51 = scmp.ne.s32.totalorder %s37, %s38
    %p52 = scmp.eq.s32.totalorder %s16, 1
    %p53 = por %p51, %p52
    %p55 = scmp.ne.s32.totalorder %s38, %s54
    %p56 = scmp.eq.s32.totalorder %s16, 0
    %p57 = por %p55, %p56
    %s59 = sadd.s32 %s58, 1
    %p62 = scmp.eq.s32.totalorder %s10, 1
    %p63 = scmp.ne.s32.totalorder %s58, %s60
    %p64 = scmp.eq.s32.totalorder %s10, 0
    %p65 = por %p63, %p64
    %p66 = scmp.ne.s32.totalorder %s58, %s60
    %p67 = scmp.eq.s32.totalorder %s15, 1
    %p68 = por %p66, %p67
    %p69 = scmp.ne.s32.totalorder %s60, %s61
    %p70 = scmp.eq.s32.totalorder %s15, 0
    %p71 = por %p69, %p70
    %p72 = scmp.ne.s32.totalorder %s60, %s61
    %p73 = scmp.eq.s32.totalorder %s16, 1
    %p74 = por %p72, %p73
    %p76 = scmp.ne.s32.totalorder %s61, %s75
    %p77 = scmp.eq.s32.totalorder %s16, 0
    %p78 = por %p76, %p77
    %s80 = sadd.s32 %s79, 1
    %p83 = scmp.eq.s32.totalorder %s10, 1
    %p84 = scmp.ne.s32.totalorder %s79, %s81
    %p85 = scmp.eq.s32.totalorder %s10, 0
    %p86 = por %p84, %p85
    %p87 = scmp.ne.s32.totalorder %s79, %s81
    %p88 = scmp.eq.s32.totalorder %s15, 1
    %p89 = por %p87, %p88
    %p90 = scmp.ne.s32.totalorder %s81, %s82
    %p91 = scmp.eq.s32.totalorder %s15, 0
    %p92 = por %p90, %p91
    %p93 = scmp.ne.s32.totalorder %s81, %s82
    %p94 = scmp.eq.s32.totalorder %s16, 1
    %p95 = por %p93, %p94
    %p97 = scmp.ne.s32.totalorder %s82, %s96
    %p98 = scmp.eq.s32.totalorder %s16, 0
    %p99 = por %p97, %p98
    %s101 = sadd.s32 %s100, 1
    %p104 = scmp.eq.s32.totalorder %s10, 1
    %p105 = scmp.ne.s32.totalorder %s100, %s102
    %p106 = scmp.eq.s32.totalorder %s10, 0
    %p107 = por %p105, %p106
    %p108 = scmp.ne.s32.totalorder %s100, %s102
    %p109 = scmp.eq.s32.totalorder %s15, 1
    %p110 = por %p108, %p109
    %p111 = scmp.ne.s32.totalorder %s102, %s103
    %p112 = scmp.eq.s32.totalorder %s15, 0
    %p113 = por %p111, %p112
    %p114 = scmp.ne.s32.totalorder %s102, %s103
    %p115 = scmp.eq.s32.totalorder %s16, 1
    %p116 = por %p114, %p115
    %p118 = scmp.ne.s32.totalorder %s103, %s117
    %p119 = scmp.eq.s32.totalorder %s16, 0
    %p120 = por %p118, %p119
    %p121 = scmp.le.s32.totalorder 1, %s10
    %p122 = scmp.lt.s32.totalorder %s10, 3
    %p123 = pnand %p121, %p122
    %p124 = pneg %p123
    // Predicated region
    $region9: #{fourier_unit_forward.2} parent=5 // pred_check
      _
    $region10: #{fourier_unit_forward.2} parent=5 // pred_check_branch
      %126 = sbr.rel (%p123) target = $region12
    $region11: #{fourier_unit_forward.2} parent=5 // pred_region
      %s127 = ssub.s32 %s10, 1
      // Predicated region
      $region13: #{fourier_unit_forward.2} parent=11 // pred_check
        %p128 = pneg %p71
      $region14: #{fourier_unit_forward.2} parent=11 // pred_check_branch
        %130 = sbr.rel (%p128) target = $region16
      $region15: #{fourier_unit_forward.2} parent=11 // pred_region
        _
      $region16: #{fourier_unit_forward.2} parent=11 // pred_fallthru
        _
    $region12: #{fourier_unit_forward.2} parent=5 // pred_fallthru
      _
    %p131 = scmp.lt.s32.totalorder %s10, 2
    // Predicated region
    $region17: #{fourier_unit_forward.2} parent=5 // pred_check
      %p132 = pneg %p131
    $region18: #{fourier_unit_forward.2} parent=5 // pred_check_branch
      %134 = sbr.rel (%p132) target = $region20
    $region19: #{fourier_unit_forward.2} parent=5 // pred_region
      // Predicated region
      $region21: #{fourier_unit_forward.2} parent=19 // pred_check
        %p135 = pneg %p44
      $region22: #{fourier_unit_forward.2} parent=19 // pred_check_branch
        %137 = sbr.rel (%p135) target = $region24
      $region23: #{fourier_unit_forward.2} parent=19 // pred_region
        %p138 = scmp.lt.s32.totalorder %s17, 1
        %s139 = scalar_select %p138, %s17, 1
        %p140 = scmp.lt.s32.totalorder %s18, 0
        %s141 = scalar_select %p140, %s18, 0
        %s142 = sadd.s32 %s141, %s139
        %s143 = smul.addr %s142, 4
        %s144 = scalar_lea.vmem %s0, %s143
      $region24: #{fourier_unit_forward.2} parent=19 // pred_fallthru
        _
    $region20: #{fourier_unit_forward.2} parent=5 // pred_fallthru
      _
    %p145 = scmp.le.s32.totalorder 1, %s10
    %p146 = scmp.lt.s32.totalorder %s10, 3
    %p147 = pnand %p145, %p146
    %p148 = pneg %p147
    // Predicated region
    $region25: #{fourier_unit_forward.2} parent=5 // pred_check
      _
    $region26: #{fourier_unit_forward.2} parent=5 // pred_check_branch
      %150 = sbr.rel (%p147) target = $region28
    $region27: #{fourier_unit_forward.2} parent=5 // pred_region
      %s151 = ssub.s32 %s10, 1
      %p152 = scmp.lt.s32.totalorder %s19, 1
      %s153 = scalar_select %p152, %s19, 1
      %p154 = scmp.lt.s32.totalorder %s20, 0
      %s155 = scalar_select %p154, %s20, 0
      %s156 = sadd.s32 %s155, %s153
      %s157 = smul.addr %s156, 4
      %s158 = scalar_lea.vmem %s0, %s157
      %p159 = pneg %p50
      %p160 = pneg %p47
      %p161 = pneg %p71
      %p162 = pneg %p68
      %p163 = pneg %p92
      %p164 = pneg %p89
      %p165 = pneg %p113
      %p166 = pneg %p110
      %p167 = scmp.lt.s32.totalorder %s19, 1
      %s168 = scalar_select %p167, %s19, 1
      %p169 = scmp.lt.s32.totalorder %s20, 0
      %s170 = scalar_select %p169, %s20, 0
      %s171 = sadd.s32 %s170, %s168
      %s172 = smul.addr %s171, 4
      %s173 = scalar_lea.vmem %s0, %s172
      %p175 = scmp.eq.s32.totalorder %s19, 0
      %p176 = scmp.eq.s32.totalorder %s20, 0
      %p177 = pnand %p175, %p176
      %p178 = pneg %p177
      // Predicated region
      $region29: #{fourier_unit_forward.2} parent=27 // pred_check
        _
      $region30: #{fourier_unit_forward.2} parent=27 // pred_check_branch
        %180 = sbr.rel (%p177) target = $region32
      $region31: #{fourier_unit_forward.2} parent=27 // pred_region
        %vm181 = vcmask 7168
        %182 = vst.msk [vmem:[%s2] sm:$0xff] %vm181, 0.0
        %183 = vst.msk [vmem:[%s3] sm:$0xff] %vm181, 0.0
      $region32: #{fourier_unit_forward.2} parent=27 // pred_fallthru
        _
      %v184 = vld [vmem:[%s1] sm:$0xf]
      %v185 = vld [vmem:[%s173] sm:$0xf]
      %vm186 = vcmask 64512
      %v188 = vsel %vm186, %v184, 0
      %vm190 = vcmask 1043456
      %v192 = vsel %vm190, %v185, 0
      %194 = vmatpush.bf16.msra.mxu0 0
      %195 = vmatpush.bf16.msra.mxu0 0
      %196 = vmatpush.bf16.msra.mxu0 0
      %197 = vmatpush.bf16.msra.mxu0 0
      %198 = vmatpush.bf16.msra.mxu0 0
      %199 = vmatpush.bf16.msra.mxu0 0
      %200 = vmatpush.bf16.msra.mxu0 0
      %201 = vmatpush.bf16.msra.mxu0 %v192
      %202 = vmatmul.bf16.gmra.mxu0 %v188
      %v203 = vpop.f32.mrf.mxu0
      %v204 = vadd.f32 0.0, %v203
      %v205 = vpop.f32.mrf.mxu0
      %206 = vdwg.mxu0
      %v207 = vld [vmem:[%s2] sm:$0xff]
      %208 = vadd.xlane.f32.xlu0 %v204
      %v209 = vpop.xlane.xlu0 %208
      %v210 = vadd.f32 %v207, %v209
      %vm211 = vcmask 7168
      %212 = vst.msk [vmem:[%s2] sm:$0xff] %vm211, %v210
      %v213 = vld [vmem:[%s3] sm:$0xff]
      %v214 = vmul.f32 %v204, %v204
      %215 = vadd.xlane.f32.xlu0 %v214
      %v216 = vpop.xlane.xlu0 %215
      %v217 = vadd.f32 %v213, %v216
      %218 = vst.msk [vmem:[%s3] sm:$0xff] %vm211, %v217
      // Predicated region
      $region33: #{fourier_unit_forward.2} parent=27 // pred_check
        %p219 = pneg %p89
      $region34: #{fourier_unit_forward.2} parent=27 // pred_check_branch
        %221 = sbr.rel (%p219) target = $region36
      $region35: #{fourier_unit_forward.2} parent=27 // pred_region
        _
      $region36: #{fourier_unit_forward.2} parent=27 // pred_fallthru
        _
      // Predicated region
      $region37: #{fourier_unit_forward.2} parent=27 // pred_check
        %p222 = pneg %p110
      $region38: #{fourier_unit_forward.2} parent=27 // pred_check_branch
        %224 = sbr.rel (%p222) target = $region40
      $region39: #{fourier_unit_forward.2} parent=27 // pred_region
        _
      $region40: #{fourier_unit_forward.2} parent=27 // pred_fallthru
        _
      // Predicated region
      $region41: #{fourier_unit_forward.2} parent=27 // pred_check
        %p225 = pneg %p89
      $region42: #{fourier_unit_forward.2} parent=27 // pred_check_branch
        %227 = sbr.rel (%p225) target = $region44
      $region43: #{fourier_unit_forward.2} parent=27 // pred_region
        _
      $region44: #{fourier_unit_forward.2} parent=27 // pred_fallthru
        _
      // Predicated region
      $region45: #{fourier_unit_forward.2} parent=27 // pred_check
        %p228 = pneg %p110
      $region46: #{fourier_unit_forward.2} parent=27 // pred_check_branch
        %230 = sbr.rel (%p228) target = $region48
      $region47: #{fourier_unit_forward.2} parent=27 // pred_region
        _
      $region48: #{fourier_unit_forward.2} parent=27 // pred_fallthru
        _
    $region28: #{fourier_unit_forward.2} parent=5 // pred_fallthru
      _
    %p231 = scmp.le.s32.totalorder 2, %s10
    // Predicated region
    $region49: #{fourier_unit_forward.2} parent=5 // pred_check
      %p232 = pneg %p231
    $region50: #{fourier_unit_forward.2} parent=5 // pred_check_branch
      %234 = sbr.rel (%p232) target = $region52
    $region51: #{fourier_unit_forward.2} parent=5 // pred_region
      %s235 = ssub.s32 %s10, 2
    $region52: #{fourier_unit_forward.2} parent=5 // pred_fallthru
      _
  $region6: #{fourier_unit_forward.2} parent=0 // loop_footer
    %s14 = sadd.s32 1, %s10
  $region7: #{fourier_unit_forward.2} parent=0 // loop_footer_branch
    %9 = sbr.rel target = $region3
  $region8: #{fourier_unit_forward.2} parent=0 // loop_exit
    _

</llo_original>
